<compile_context>
chip_gen: v5e
topology: v5e:2x2
jax: 0.10.0
libtpu: 0.0.40
codegen_flags: <defaults>
</compile_context>

<pallas_src>
import functools

import jax
import jax.numpy as jnp
from jax import lax
from jax.experimental import pallas as pl
from jax.experimental.pallas import tpu as pltpu


# ------------------------------ small helpers -------------------------------

def _row_tile(m, preferred=256):
    """Row-tile for LN/linear/MLP kernels.  If m is small, one full block;
    otherwise prefer a clean divisor; else use `preferred` with a masked tail
    block (grid uses pl.cdiv)."""
    if m <= preferred:
        return m
    for cand in (preferred, 512, 128, 64, 32, 16, 8):
        if m % cand == 0:
            return cand
    return preferred            # uneven grid; Pallas masks the tail block


def _seq_tile(s, preferred=256):
    """Query-tile for attention.  Must divide S exactly (keys/values are not
    masked in-kernel).  TODO(synk): masked tail query tiles for prime-ish S."""
    for cand in (preferred, 128, 64, 32, 16, 8):
        if s % cand == 0:
            return cand
    return s


def _compiler_params(sem, est_bytes=0):
    """dimension_semantics + (only when needed) an explicit scoped-VMEM bump.
    TODO(synk): on v7x (64 MiB physical) prefer H-tiling / single-buffered
    resident weights instead of raising the limit."""
    kwargs = {"dimension_semantics": sem}
    if est_bytes > (30 << 20):
        kwargs["vmem_limit_bytes"] = min(int(est_bytes), 112 << 20)
    return pltpu.CompilerParams(**kwargs)


# ------------------------------ Pallas kernels ------------------------------

def _patch_embed_kernel(x_ref, w_ref, b_ref, pos_ref, o_ref):
    """(N, pdim) @ (pdim, D) + bias + pos, bf16 in/out, f32 accumulation."""
    y = jnp.dot(x_ref[...], w_ref[...], preferred_element_type=jnp.float32)
    y = y + b_ref[...].astype(jnp.float32) + pos_ref[...].astype(jnp.float32)
    o_ref[...] = y.astype(o_ref.dtype)


def pallas_patch_embed(patches, w, b, pos):
    """Single-image patch embed.  patches:(B,N,pdim) bf16, w:(pdim,D) bf16,
    b:(1,D) f32, pos:(1,N,D) bf16 -> (B,N,D) bf16."""
    B, N, P = patches.shape
    D = w.shape[1]
    return pl.pallas_call(
        _patch_embed_kernel,
        out_shape=jax.ShapeDtypeStruct((B, N, D), jnp.bfloat16),
        grid=(B,),
        in_specs=[
            pl.BlockSpec((None, N, P), lambda b_: (b_, 0, 0)),
            pl.BlockSpec((P, D), lambda b_: (0, 0)),
            pl.BlockSpec((1, D), lambda b_: (0, 0)),
            pl.BlockSpec((None, N, D), lambda b_: (0, 0, 0)),
        ],
        out_specs=pl.BlockSpec((None, N, D), lambda b_: (b_, 0, 0)),
        compiler_params=_compiler_params(("parallel",)),
    )(patches, w, b, pos)


def pallas_patch_embed_pair(p1, w1, b1, pos1, p2, w2, b2, pos2):
    """Both patch embeds in one pallas_call with a stacked grid axis (2, B)
    when the two images have the same patch count; falls back to two calls."""
    if p1.shape == p2.shape and pos1.shape == pos2.shape:
        B, N, P = p1.shape
        D = w1.shape[1]
        xs = jnp.stack([p1, p2])            # (2, B, N, P) bf16
        ws = jnp.stack([w1, w2])            # (2, P, D)    bf16
        bs = jnp.stack([b1, b2])            # (2, 1, D)    f32
        ps = jnp.stack([pos1[0], pos2[0]])  # (2, N, D)    bf16
        out = pl.pallas_call(
            _patch_embed_kernel,
            out_shape=jax.ShapeDtypeStruct((2, B, N, D), jnp.bfloat16),
            grid=(2, B),
            in_specs=[
                pl.BlockSpec((None, None, N, P), lambda g, b: (g, b, 0, 0)),
                pl.BlockSpec((None, P, D), lambda g, b: (g, 0, 0)),
                pl.BlockSpec((None, 1, D), lambda g, b: (g, 0, 0)),
                pl.BlockSpec((None, N, D), lambda g, b: (g, 0, 0)),
            ],
            out_specs=pl.BlockSpec((None, None, N, D),
                                   lambda g, b: (g, b, 0, 0)),
            compiler_params=_compiler_params(("parallel", "parallel")),
        )(xs, ws, bs, ps)
        return out[0], out[1]
    return (pallas_patch_embed(p1, w1, b1, pos1),
            pallas_patch_embed(p2, w2, b2, pos2))


def _ln_linear_kernel(x_ref, g_ref, beta_ref, w_ref, b_ref, o_ref, *, eps):
    """Fused LayerNorm(x) @ W + b on a (tm, K) row tile; W is the full
    (K, N) resident block.  bf16 in/out, f32 LN + accumulation."""
    x = x_ref[...].astype(jnp.float32)
    mu = jnp.mean(x, axis=-1, keepdims=True)
    var = jnp.mean(jnp.square(x - mu), axis=-1, keepdims=True)
    h = (x - mu) * lax.rsqrt(var + eps)
    h = h * g_ref[...].astype(jnp.float32) + beta_ref[...].astype(jnp.float32)
    y = jnp.dot(h.astype(jnp.bfloat16), w_ref[...],
                preferred_element_type=jnp.float32)
    o_ref[...] = (y + b_ref[...].astype(jnp.float32)).astype(o_ref.dtype)


def pallas_ln_linear(x, g, beta, w, b, eps=1e-6):
    """y = LayerNorm(x) @ w + b.  x:(M,K) bf16, w:(K,N) bf16 -> (M,N) bf16.
    Grid over rows only: the weight stays VMEM-resident (fetched once)."""
    M, K = x.shape
    N = w.shape[1]
    tm = _row_tile(M)
    est = 2 * (tm * K * 2 + K * N * 2 + N * 4 + tm * N * 2) + tm * K * 4 + (4 << 20)
    return pl.pallas_call(
        functools.partial(_ln_linear_kernel, eps=eps),
        out_shape=jax.ShapeDtypeStruct((M, N), jnp.bfloat16),
        grid=(pl.cdiv(M, tm),),
        in_specs=[
            pl.BlockSpec((tm, K), lambda i: (i, 0)),
            pl.BlockSpec((1, K), lambda i: (0, 0)),
            pl.BlockSpec((1, K), lambda i: (0, 0)),
            pl.BlockSpec((K, N), lambda i: (0, 0)),      # resident weight
            pl.BlockSpec((1, N), lambda i: (0, 0)),
        ],
        out_specs=pl.BlockSpec((tm, N), lambda i: (i, 0)),
        compiler_params=_compiler_params(("parallel",), est),
    )(x, g, beta, w, b)


def _attn_proj_kernel(qkv_ref, res_ref, wo_ref, bo_ref, o_ref, attn_scr,
                      *, num_heads, scale, tq):
    """One query tile, all heads: softmax(QK^T)V, output proj, +residual.

    qkv_ref is the full (S, 3D) bf16 slab for this batch element (resident
    across the query-tile grid axis: constant block index).  Per-head results
    go into a VMEM scratch at static column offsets; temporaries for one head
    die at the scratch store, so only one (tq, S) score matrix is live."""
    D = qkv_ref.shape[1] // 3
    hd = D // num_heads
    row0 = pl.program_id(1) * tq
    if tq % 8 == 0:
        row0 = pl.multiple_of(row0, tq)
    for h in range(num_heads):                      # static, small head count
        q = qkv_ref[pl.ds(row0, tq), pl.ds(h * hd, hd)]          # (tq, hd) bf16
        k = qkv_ref[:, pl.ds(D + h * hd, hd)]                    # (S,  hd) bf16
        v = qkv_ref[:, pl.ds(2 * D + h * hd, hd)]                # (S,  hd) bf16
        s = lax.dot_general(q, k, (((1,), (1,)), ((), ())),
                            preferred_element_type=jnp.float32) * scale
        s = s - jnp.max(s, axis=-1, keepdims=True)
        p = jnp.exp(s)
        p = p * (1.0 / jnp.sum(p, axis=-1, keepdims=True))
        attn_scr[:, h * hd:(h + 1) * hd] = jnp.dot(
            p.astype(jnp.bfloat16), v, preferred_element_type=jnp.float32)
    y = jnp.dot(attn_scr[...].astype(jnp.bfloat16), wo_ref[...],
                preferred_element_type=jnp.float32)
    y = y + bo_ref[...].astype(jnp.float32) + res_ref[...].astype(jnp.float32)
    o_ref[...] = y.astype(o_ref.dtype)


def pallas_attn_block(qkv, x_res, wo, bo, *, num_heads, scale):
    """qkv:(B,S,3D) bf16, x_res:(B,S,D) bf16, wo:(D,D) bf16 -> (B,S,D) bf16."""
    B, S, threeD = qkv.shape
    D = threeD // 3
    tq = _seq_tile(S)
    est = (2 * (S * threeD * 2 + tq * D * 2 + D * D * 2 + D * 4 + tq * D * 2)
           + tq * D * 4 + tq * S * 4 + (4 << 20))
    return pl.pallas_call(
        functools.partial(_attn_proj_kernel, num_heads=num_heads,
                          scale=scale, tq=tq),
        out_shape=jax.ShapeDtypeStruct((B, S, D), jnp.bfloat16),
        grid=(B, S // tq),
        in_specs=[
            # full qkv slab, constant over the query-tile axis -> one DMA per b
            pl.BlockSpec((None, S, threeD), lambda b, qi: (b, 0, 0)),
            pl.BlockSpec((None, tq, D), lambda b, qi: (b, qi, 0)),
            pl.BlockSpec((D, D), lambda b, qi: (0, 0)),
            pl.BlockSpec((1, D), lambda b, qi: (0, 0)),
        ],
        out_specs=pl.BlockSpec((None, tq, D), lambda b, qi: (b, qi, 0)),
        scratch_shapes=[pltpu.VMEM((tq, D), jnp.float32)],
        compiler_params=_compiler_params(("parallel", "parallel"), est),
    )(qkv, x_res, wo, bo)


def _ln_mlp_kernel(x_ref, g_ref, beta_ref, w1_ref, b1_ref, w2_ref, b2_ref,
                   o_ref, *, eps):
    """Fused: out = x + fc2(GELU(fc1(LayerNorm(x)))) on a (tm, D) row tile.
    Weights are resident; hidden never touches HBM.  bf16 in/out."""
    x = x_ref[...].astype(jnp.float32)
    mu = jnp.mean(x, axis=-1, keepdims=True)
    var = jnp.mean(jnp.square(x - mu), axis=-1, keepdims=True)
    h = (x - mu) * lax.rsqrt(var + eps)
    h = h * g_ref[...].astype(jnp.float32) + beta_ref[...].astype(jnp.float32)
    h = jnp.dot(h.astype(jnp.bfloat16), w1_ref[...],
                preferred_element_type=jnp.float32) + b1_ref[...].astype(jnp.float32)
    # exact erf GELU to match nn.GELU(); switch to approximate=True if VALU-bound
    h = jax.nn.gelu(h, approximate=False)
    y = jnp.dot(h.astype(jnp.bfloat16), w2_ref[...],
                preferred_element_type=jnp.float32) + b2_ref[...].astype(jnp.float32)
    o_ref[...] = (x + y).astype(o_ref.dtype)


def pallas_ln_mlp(x, g, beta, w1, b1, w2, b2, eps=1e-6):
    """x:(M,D) bf16, w1:(D,H) bf16, w2:(H,D) bf16 -> (M,D) bf16 (incl. residual)."""
    M, D = x.shape
    H = w1.shape[1]
    tm = _row_tile(M)
    est = (2 * (tm * D * 2 + D * H * 2 + H * 4 + H * D * 2 + D * 4 + tm * D * 2)
           + tm * H * 4 + (8 << 20))
    return pl.pallas_call(
        functools.partial(_ln_mlp_kernel, eps=eps),
        out_shape=jax.ShapeDtypeStruct((M, D), jnp.bfloat16),
        grid=(pl.cdiv(M, tm),),
        in_specs=[
            pl.BlockSpec((tm, D), lambda i: (i, 0)),
            pl.BlockSpec((1, D), lambda i: (0, 0)),
            pl.BlockSpec((1, D), lambda i: (0, 0)),
            pl.BlockSpec((D, H), lambda i: (0, 0)),      # resident weights
            pl.BlockSpec((1, H), lambda i: (0, 0)),
            pl.BlockSpec((H, D), lambda i: (0, 0)),
            pl.BlockSpec((1, D), lambda i: (0, 0)),
        ],
        out_specs=pl.BlockSpec((tm, D), lambda i: (i, 0)),
        compiler_params=_compiler_params(("parallel",), est),
    )(x, g, beta, w1, b1, w2, b2)


def _ln_heads_kernel(x1_ref, x2_ref, g_ref, beta_ref, w1_ref, b1_ref,
                     w2_ref, b2_ref, o1_ref, o2_ref, *, eps):
    """Final LayerNorm on the two CLS rows + both heads (lane-padded outputs)."""
    g = g_ref[...].astype(jnp.float32)
    be = beta_ref[...].astype(jnp.float32)

    def ln(x):
        mu = jnp.mean(x, axis=-1, keepdims=True)
        var = jnp.mean(jnp.square(x - mu), axis=-1, keepdims=True)
        return (x - mu) * lax.rsqrt(var + eps) * g + be

    n1 = ln(x1_ref[...].astype(jnp.float32))
    n2 = ln(x2_ref[...].astype(jnp.float32))
    y1 = jnp.dot(n1.astype(jnp.bfloat16), w1_ref[...],
                 preferred_element_type=jnp.float32) + b1_ref[...].astype(jnp.float32)
    y2 = jnp.dot(n2.astype(jnp.bfloat16), w2_ref[...],
                 preferred_element_type=jnp.float32) + b2_ref[...].astype(jnp.float32)
    o1_ref[...] = y1.astype(o1_ref.dtype)
    o2_ref[...] = y2.astype(o2_ref.dtype)


def pallas_ln_heads(x1tok, x2tok, g, beta, w1p, b1p, w2p, b2p, eps=1e-6):
    """x1tok/x2tok:(B,D) bf16 (pre-norm CLS rows), w*p padded to 128 lanes."""
    B, D = x1tok.shape
    N1 = w1p.shape[1]
    N2 = w2p.shape[1]
    return pl.pallas_call(
        functools.partial(_ln_heads_kernel, eps=eps),
        out_shape=(jax.ShapeDtypeStruct((B, N1), jnp.float32),
                   jax.ShapeDtypeStruct((B, N2), jnp.float32)),
        grid=(1,),
        in_specs=[
            pl.BlockSpec((B, D), lambda i: (0, 0)),
            pl.BlockSpec((B, D), lambda i: (0, 0)),
            pl.BlockSpec((1, D), lambda i: (0, 0)),
            pl.BlockSpec((1, D), lambda i: (0, 0)),
            pl.BlockSpec((D, N1), lambda i: (0, 0)),
            pl.BlockSpec((1, N1), lambda i: (0, 0)),
            pl.BlockSpec((D, N2), lambda i: (0, 0)),
            pl.BlockSpec((1, N2), lambda i: (0, 0)),
        ],
        out_specs=(pl.BlockSpec((B, N1), lambda i: (0, 0)),
                   pl.BlockSpec((B, N2), lambda i: (0, 0))),
        compiler_params=_compiler_params(("arbitrary",)),
    )(x1tok, x2tok, g, beta, w1p, b1p, w2p, b2p)


# ----------------------------- model glue (JAX) -----------------------------

def patchify(x, patch):
    """NCHW image -> (B, num_patches, C*patch*patch) with conv-equivalent ordering."""
    B, C, H, W = x.shape
    nh, nw = H // patch, W // patch
    x = x.reshape(B, C, nh, patch, nw, patch)
    x = x.transpose(0, 2, 4, 1, 3, 5)                # (B, nh, nw, C, p, p)
    return x.reshape(B, nh * nw, C * patch * patch)


def vitdd_forward(params, x1, x2, *, patch=16, num_heads=4):
    B = x1.shape[0]
    D = params["cls1"].shape[-1]
    hd = D // num_heads
    scale = hd ** -0.5

    # patch embeds (conv-as-matmul), pos-embed add fused in the epilogue,
    # both images share one pallas_call via a stacked grid axis.
    p1 = patchify(x1, patch).astype(jnp.bfloat16)
    p2 = patchify(x2, patch).astype(jnp.bfloat16)
    e1, e2 = pallas_patch_embed_pair(
        p1, params["pe1_w"], params["pe1_b"], params["pos1"],
        p2, params["pe2_w"], params["pe2_b"], params["pos2"])

    # concat [cls_token, cls_token2, x1, x2] — residual stream kept in bf16.
    cls1 = jnp.broadcast_to(params["cls1"], (B, 1, D)).astype(jnp.bfloat16)
    cls2 = jnp.broadcast_to(params["cls2"], (B, 1, D)).astype(jnp.bfloat16)
    x = jnp.concatenate([cls1, cls2, e1, e2], axis=1)            # (B, S, D) bf16
    S = x.shape[1]

    # transformer blocks: 3 fused pallas_calls per block.
    for blk in params["blocks"]:
        qkv = pallas_ln_linear(x.reshape(B * S, D), blk["ln1_g"], blk["ln1_b"],
                               blk["qkv_w"], blk["qkv_b"])       # (B*S, 3D) bf16
        x = pallas_attn_block(qkv.reshape(B, S, 3 * D), x, blk["proj_w"],
                              blk["proj_b"], num_heads=num_heads, scale=scale)
        x = pallas_ln_mlp(x.reshape(B * S, D), blk["ln2_g"], blk["ln2_b"],
                          blk["fc1_w"], blk["fc1_b"],
                          blk["fc2_w"], blk["fc2_b"]).reshape(B, S, D)

    # final norm (only the two CLS rows matter — LN is row-wise) + dual heads.
    y1p, y2p = pallas_ln_heads(x[:, 0, :], x[:, 1, :],
                               params["norm_g"], params["norm_b"],
                               params["head1_wp"], params["head1_bp"],
                               params["head2_wp"], params["head2_bp"])
    return y1p[:, :params["nc1"]], y2p[:, :params["nc2"]]


def init_params(key, *, D, depth, mlp_ratio, patch, C, img1, img2, nc1, nc2):
    keys = iter(jax.random.split(key, 16 + 8 * depth))

    def nrm(shape, std=0.02, dtype=jnp.float32):
        return (jax.random.normal(next(keys), shape, jnp.float32) * std).astype(dtype)

    pdim = C * patch * patch
    n1 = (img1 // patch) ** 2
    n2 = (img2 // patch) ** 2
    hidden = int(D * mlp_ratio)

    def pad_head(w, b, lane=128):
        """Pad a (D, n) head weight / (n,) bias to a lane-dense multiple of 128."""
        n = w.shape[1]
        npad = max(lane, ((n + lane - 1) // lane) * lane)
        wp = jnp.zeros((w.shape[0], npad), w.dtype).at[:, :n].set(w)
        bp = jnp.zeros((1, npad), jnp.float32).at[0, :n].set(b)
        return wp, bp

    h1_wp, h1_bp = pad_head(nrm((D, nc1), dtype=jnp.bfloat16),
                            jnp.zeros((nc1,), jnp.float32))
    h2_wp, h2_bp = pad_head(nrm((D, nc2), dtype=jnp.bfloat16),
                            jnp.zeros((nc2,), jnp.float32))

    # NOTE: backbone.pos_embed is shaped (1, num_patches, D) so that the
    # forward's `x1 + pos_embed` broadcast (as written in the module) is valid.
    params = dict(
        pe1_w=nrm((pdim, D), dtype=jnp.bfloat16), pe1_b=jnp.zeros((1, D), jnp.float32),
        pe2_w=nrm((pdim, D), dtype=jnp.bfloat16), pe2_b=jnp.zeros((1, D), jnp.float32),
        pos1=nrm((1, n1, D), dtype=jnp.bfloat16),
        pos2=nrm((1, n2, D), dtype=jnp.bfloat16),
        cls1=nrm((1, 1, D)),
        cls2=jnp.zeros((1, 1, D), jnp.float32),      # cls_token2 initialized to zeros
        norm_g=jnp.ones((1, D), jnp.float32), norm_b=jnp.zeros((1, D), jnp.float32),
        head1_wp=h1_wp, head1_bp=h1_bp, nc1=nc1,
        head2_wp=h2_wp, head2_bp=h2_bp, nc2=nc2,
        blocks=[],
    )
    for _ in range(depth):
        params["blocks"].append(dict(
            ln1_g=jnp.ones((1, D), jnp.float32), ln1_b=jnp.zeros((1, D), jnp.float32),
            qkv_w=nrm((D, 3 * D), dtype=jnp.bfloat16),
            qkv_b=jnp.zeros((1, 3 * D), jnp.float32),
            proj_w=nrm((D, D), dtype=jnp.bfloat16),
            proj_b=jnp.zeros((1, D), jnp.float32),
            ln2_g=jnp.ones((1, D), jnp.float32), ln2_b=jnp.zeros((1, D), jnp.float32),
            fc1_w=nrm((D, hidden), dtype=jnp.bfloat16),
            fc1_b=jnp.zeros((1, hidden), jnp.float32),
            fc2_w=nrm((hidden, D), dtype=jnp.bfloat16),
            fc2_b=jnp.zeros((1, D), jnp.float32),
        ))
    return params


if __name__ == "__main__":
    # small config: embed_dim=64, depth=2, heads=4, 32x32 images -> 4 patches each
    B, C = 2, 3
    IMG1, IMG2, PATCH = 32, 32, 16
    D, DEPTH, HEADS = 64, 2, 4
    NC1, NC2 = 10, 5

    key = jax.random.PRNGKey(0)
    kp, k1, k2 = jax.random.split(key, 3)
    params = init_params(kp, D=D, depth=DEPTH, mlp_ratio=4.0, patch=PATCH,
                         C=C, img1=IMG1, img2=IMG2, nc1=NC1, nc2=NC2)

    x1 = jax.random.normal(k1, (B, C, IMG1, IMG1), jnp.float32)
    x2 = jax.random.normal(k2, (B, C, IMG2, IMG2), jnp.float32)

    y1, y2 = vitdd_forward(params, x1, x2, patch=PATCH, num_heads=HEADS)
    jax.block_until_ready((y1, y2))

    assert y1.shape == (B, NC1) and y2.shape == (B, NC2)
    assert jnp.all(jnp.isfinite(y1)) and jnp.all(jnp.isfinite(y2))
    print("KERNEL_OK")
</pallas_src>

<mosaic_0001>
module attributes {stable_mosaic.version = 11 : i64} {
  func.func @_patch_embed_kernel(%arg0: i32, %arg1: i32, %arg2: memref<1x1x4x768xbf16, #tpu.memory_space<vmem>>, %arg3: memref<1x768x64xbf16, #tpu.memory_space<vmem>>, %arg4: memref<1x1x64xf32, #tpu.memory_space<vmem>>, %arg5: memref<1x4x64xbf16, #tpu.memory_space<vmem>>, %arg6: memref<1x1x4x64xbf16, #tpu.memory_space<vmem>>) attributes {dimension_semantics = [#tpu.dimension_semantics<parallel>, #tpu.dimension_semantics<parallel>], iteration_bounds = array<i64: 2, 2>, scalar_prefetch = 0 : i64, scratch_operands = 0 : i64, tpu.core_type = #tpu.core_type<tc>, window_params = [{transform_indices = @transform_0, window_bounds = array<i64: 1, 1, 4, 768>}, {transform_indices = @transform_1, window_bounds = array<i64: 1, 768, 64>}, {transform_indices = @transform_2, window_bounds = array<i64: 1, 1, 64>}, {transform_indices = @transform_3, window_bounds = array<i64: 1, 4, 64>}, {transform_indices = @transform_4, window_bounds = array<i64: 1, 1, 4, 64>}]} {
    %c0 = arith.constant 0 : index
    %c0_0 = arith.constant 0 : index
    %c0_1 = arith.constant 0 : index
    %c0_2 = arith.constant 0 : index
    %0 = vector.load %arg2[%c0, %c0_0, %c0_1, %c0_2] : memref<1x1x4x768xbf16, #tpu.memory_space<vmem>>, vector<1x1x4x768xbf16>
    %1 = vector.shape_cast %0 : vector<1x1x4x768xbf16> to vector<4x768xbf16>
    %c0_3 = arith.constant 0 : index
    %c0_4 = arith.constant 0 : index
    %c0_5 = arith.constant 0 : index
    %2 = vector.load %arg3[%c0_3, %c0_4, %c0_5] : memref<1x768x64xbf16, #tpu.memory_space<vmem>>, vector<1x768x64xbf16>
    %3 = vector.shape_cast %2 : vector<1x768x64xbf16> to vector<768x64xbf16>
    %cst = arith.constant dense<0.000000e+00> : vector<4x64xf32>
    %4 = tpu.matmul %1, %3, %cst {dimension_numbers = #tpu.dot_dimension_numbers<[1], [0], [0], [1], [0, 0, 1, 1], [], []>} : vector<4x768xbf16>, vector<768x64xbf16>, vector<4x64xf32> -> vector<4x64xf32>
    %c0_6 = arith.constant 0 : index
    %c0_7 = arith.constant 0 : index
    %c0_8 = arith.constant 0 : index
    %5 = vector.load %arg4[%c0_6, %c0_7, %c0_8] : memref<1x1x64xf32, #tpu.memory_space<vmem>>, vector<1x1x64xf32>
    %6 = vector.shape_cast %5 : vector<1x1x64xf32> to vector<1x64xf32>
    %7 = vector.broadcast %6 : vector<1x64xf32> to vector<4x64xf32>
    %8 = arith.addf %4, %7 : vector<4x64xf32>
    %c0_9 = arith.constant 0 : index
    %c0_10 = arith.constant 0 : index
    %c0_11 = arith.constant 0 : index
    %9 = vector.load %arg5[%c0_9, %c0_10, %c0_11] : memref<1x4x64xbf16, #tpu.memory_space<vmem>>, vector<1x4x64xbf16>
    %10 = vector.shape_cast %9 : vector<1x4x64xbf16> to vector<4x64xbf16>
    %11 = arith.extf %10 : vector<4x64xbf16> to vector<4x64xf32>
    %12 = arith.addf %8, %11 : vector<4x64xf32>
    %13 = arith.truncf %12 : vector<4x64xf32> to vector<4x64xbf16>
    %c0_12 = arith.constant 0 : index
    %c0_13 = arith.constant 0 : index
    %c0_14 = arith.constant 0 : index
    %c0_15 = arith.constant 0 : index
    %14 = vector.load %arg6[%c0_12, %c0_13, %c0_14, %c0_15] : memref<1x1x4x64xbf16, #tpu.memory_space<vmem>>, vector<1x1x4x64xbf16>
    %15 = vector.shape_cast %14 : vector<1x1x4x64xbf16> to vector<4x64xbf16>
    %16 = vector.shape_cast %13 : vector<4x64xbf16> to vector<1x1x4x64xbf16>
    tpu.vector_store %arg6[%c0_12, %c0_13, %c0_14, %c0_15], %16 {strides = array<i32>} : memref<1x1x4x64xbf16, #tpu.memory_space<vmem>>, vector<1x1x4x64xbf16>,
    return
  }
  func.func @transform_0(%arg0: i32, %arg1: i32) -> (i32, i32, i32, i32) {
    %c0_i32 = arith.constant 0 : i32
    %c0_i32_0 = arith.constant 0 : i32
    %c0_i32_1 = arith.constant 0 : i32
    return %arg0, %arg1, %c0_i32, %c0_i32_0 : i32, i32, i32, i32
  }
  func.func @transform_1(%arg0: i32, %arg1: i32) -> (i32, i32, i32) {
    %c0_i32 = arith.constant 0 : i32
    %c0_i32_0 = arith.constant 0 : i32
    %c0_i32_1 = arith.constant 0 : i32
    return %arg0, %c0_i32, %c0_i32_0 : i32, i32, i32
  }
  func.func @transform_2(%arg0: i32, %arg1: i32) -> (i32, i32, i32) {
    %c0_i32 = arith.constant 0 : i32
    %c0_i32_0 = arith.constant 0 : i32
    %c0_i32_1 = arith.constant 0 : i32
    return %arg0, %c0_i32, %c0_i32_0 : i32, i32, i32
  }
  func.func @transform_3(%arg0: i32, %arg1: i32) -> (i32, i32, i32) {
    %c0_i32 = arith.constant 0 : i32
    %c0_i32_0 = arith.constant 0 : i32
    %c0_i32_1 = arith.constant 0 : i32
    return %arg0, %c0_i32, %c0_i32_0 : i32, i32, i32
  }
  func.func @transform_4(%arg0: i32, %arg1: i32) -> (i32, i32, i32, i32) {
    %c0_i32 = arith.constant 0 : i32
    %c0_i32_0 = arith.constant 0 : i32
    %c0_i32_1 = arith.constant 0 : i32
    return %arg0, %arg1, %c0_i32, %c0_i32_0 : i32, i32, i32, i32
  }
}

</mosaic_0001>

<llo_original>
// kernel: tpu_custom_call.1
$region0: #{tpu_custom_call.1}
  #allocation0 [shape = 'u32[]', space=smem, size = 0x4, offset = 0x4, fixed_abs, tag = 'smem constant byte address 0x4 - core index']
  #allocation1 [shape = 'u32[72,128]{1,0:T(1,128)}', space=vmem, size = 0x9000, scoped, tag = 'internal scratch']
  %s0 = inlined_call_operand.vmem [shape: bf16[2,2,4,768], index: 0, kind: input, shape index: {}]
  %s1 = inlined_call_operand.vmem [shape: bf16[2,768,64], index: 1, kind: input, shape index: {}]
  %s2 = inlined_call_operand.vmem [shape: f32[2,1,64], index: 2, kind: input, shape index: {}]
  %s3 = inlined_call_operand.vmem [shape: bf16[2,4,64], index: 3, kind: input, shape index: {}]
  %s4 = inlined_call_operand.hbm [shape: bf16[2,2,4,64], index: 4, kind: output, shape index: {}]
  %s5 = sld [smem:[#allocation0]]
  $region49: #{tpu_custom_call.1} parent=0
    _
  %s7 = ssub.s32 1, %s5
  %s8 = scalar_select 0, %s7, %s5
  $region1: #{tpu_custom_call.1} parent=0
    #allocation2 [shape = 'u8[2048]{0}', space=vmem, size = 0x800, scoped, tag = 'output window, operand 0']
    #allocation3 [shape = 's32[2]{0}', space=sflag, size = 0x8, scoped, tag = 'scoped memory for tpu_custom_call.1']
    %9 = vsyncpa [#allocation3], 0
    %s10 = scalar_lea.sflag [#allocation3], 1
    %11 = vsyncpa %s10, 0
    loop: start=0, step=1, limit=6
    $region2: #{tpu_custom_call.1} parent=1 // loop_pre_header
      _
    $region3: #{tpu_custom_call.1} parent=1 // loop_header
      %s13 = sphi 0, %s17
      %p14 = scmp.ge.s32.totalorder %s13, 6
      %s20 = sphi 0, %s32
      %s21 = sphi 0, %s28
      %s22 = sphi 0, %s20
      %s23 = sphi 0, %s21
      %s24 = sphi 0, %s22
      %s25 = sphi 0, %s23
      %s37 = sphi 0, %s39
      %s40 = sphi 0, %s37
      %s41 = sphi 0, %s40
      %s57 = sphi 0, %s41
      %s63 = sphi 0, %s65
      %s66 = sphi 0, %s63
      %s67 = sphi 0, %s66
      %s83 = sphi 0, %s67
      %s89 = sphi 0, %s91
      %s92 = sphi 0, %s89
      %s93 = sphi 0, %s92
      %s109 = sphi 0, %s93
      %s115 = sphi 0, %s117
      %s118 = sphi 0, %s115
      %s119 = sphi 0, %s118
      %s135 = sphi 0, %s119
      %s143 = sphi 0, %s145
      %s146 = sphi 0, %s143
      %s147 = sphi 0, %s146
      %s163 = sphi 0, %s147
    $region4: #{tpu_custom_call.1} parent=1 // loop_header_branch
      %16 = sbr.rel (%p14) target = $region8
    $region5: #{tpu_custom_call.1} parent=1 // loop_body
      %s18 = ssub.s32 %s13, 1
      %s19 = ssub.s32 %s13, 2
      %s26 = sadd.s32 1, %s21
      %p27 = scmp.ge.s32.totalorder %s26, 2
      %s28 = scalar_select %p27, 0, %s26
      %s29 = sadd.s32 1, %s20
      %s30 = scalar_select %p27, %s29, %s20
      %p31 = scmp.ge.s32.totalorder %s30, 2
      %s32 = scalar_select %p31, 0, %s30
      %s33 = ssub.s32 %s20, %s32
      %s34 = ssub.s32 %s21, %s28
      %s35 = sor.u32 %s33, %s34
      %p36 = scmp.eq.s32.totalorder %s35, 0
      %s38 = sadd.s32 %s37, 1
      %s39 = scalar_select %p36, %s37, %s38
      %p42 = pneg %p36
      %p43 = scmp.eq.s32.totalorder %s13, 3
      %p44 = por %p42, %p43
      %p45 = scmp.ne.s32.totalorder %s37, %s40
      %p46 = scmp.eq.s32.totalorder %s13, 0
      %p47 = por %p45, %p46
      %p48 = scmp.ne.s32.totalorder %s37, %s40
      %p49 = scmp.eq.s32.totalorder %s18, 3
      %p50 = por %p48, %p49
      %p51 = scmp.ne.s32.totalorder %s40, %s41
      %p52 = scmp.eq.s32.totalorder %s18, 0
      %p53 = por %p51, %p52
      %p54 = scmp.ne.s32.totalorder %s40, %s41
      %p55 = scmp.eq.s32.totalorder %s19, 3
      %p56 = por %p54, %p55
      %p58 = scmp.ne.s32.totalorder %s41, %s57
      %p59 = scmp.eq.s32.totalorder %s19, 0
      %p60 = por %p58, %p59
      %s61 = ssub.s32 %s20, %s32
      %p62 = scmp.eq.s32.totalorder %s61, 0
      %s64 = sadd.s32 %s63, 1
      %s65 = scalar_select %p62, %s63, %s64
      %p68 = pneg %p62
      %p69 = scmp.eq.s32.totalorder %s13, 3
      %p70 = por %p68, %p69
      %p71 = scmp.ne.s32.totalorder %s63, %s66
      %p72 = scmp.eq.s32.totalorder %s13, 0
      %p73 = por %p71, %p72
      %p74 = scmp.ne.s32.totalorder %s63, %s66
      %p75 = scmp.eq.s32.totalorder %s18, 3
      %p76 = por %p74, %p75
      %p77 = scmp.ne.s32.totalorder %s66, %s67
      %p78 = scmp.eq.s32.totalorder %s18, 0
      %p79 = por %p77, %p78
      %p80 = scmp.ne.s32.totalorder %s66, %s67
      %p81 = scmp.eq.s32.totalorder %s19, 3
      %p82 = por %p80, %p81
      %p84 = scmp.ne.s32.totalorder %s67, %s83
      %p85 = scmp.eq.s32.totalorder %s19, 0
      %p86 = por %p84, %p85
      %s87 = ssub.s32 %s20, %s32
      %p88 = scmp.eq.s32.totalorder %s87, 0
      %s90 = sadd.s32 %s89, 1
      %s91 = scalar_select %p88, %s89, %s90
      %p94 = pneg %p88
      %p95 = scmp.eq.s32.totalorder %s13, 3
      %p96 = por %p94, %p95
      %p97 = scmp.ne.s32.totalorder %s89, %s92
      %p98 = scmp.eq.s32.totalorder %s13, 0
      %p99 = por %p97, %p98
      %p100 = scmp.ne.s32.totalorder %s89, %s92
      %p101 = scmp.eq.s32.totalorder %s18, 3
      %p102 = por %p100, %p101
      %p103 = scmp.ne.s32.totalorder %s92, %s93
      %p104 = scmp.eq.s32.totalorder %s18, 0
      %p105 = por %p103, %p104
      %p106 = scmp.ne.s32.totalorder %s92, %s93
      %p107 = scmp.eq.s32.totalorder %s19, 3
      %p108 = por %p106, %p107
      %p110 = scmp.ne.s32.totalorder %s93, %s109
      %p111 = scmp.eq.s32.totalorder %s19, 0
      %p112 = por %p110, %p111
      %s113 = ssub.s32 %s20, %s32
      %p114 = scmp.eq.s32.totalorder %s113, 0
      %s116 = sadd.s32 %s115, 1
      %s117 = scalar_select %p114, %s115, %s116
      %p120 = pneg %p114
      %p121 = scmp.eq.s32.totalorder %s13, 3
      %p122 = por %p120, %p121
      %p123 = scmp.ne.s32.totalorder %s115, %s118
      %p124 = scmp.eq.s32.totalorder %s13, 0
      %p125 = por %p123, %p124
      %p126 = scmp.ne.s32.totalorder %s115, %s118
      %p127 = scmp.eq.s32.totalorder %s18, 3
      %p128 = por %p126, %p127
      %p129 = scmp.ne.s32.totalorder %s118, %s119
      %p130 = scmp.eq.s32.totalorder %s18, 0
      %p131 = por %p129, %p130
      %p132 = scmp.ne.s32.totalorder %s118, %s119
      %p133 = scmp.eq.s32.totalorder %s19, 3
      %p134 = por %p132, %p133
      %p136 = scmp.ne.s32.totalorder %s119, %s135
      %p137 = scmp.eq.s32.totalorder %s19, 0
      %p138 = por %p136, %p137
      %s139 = ssub.s32 %s20, %s32
      %s140 = ssub.s32 %s21, %s28
      %s141 = sor.u32 %s139, %s140
      %p142 = scmp.eq.s32.totalorder %s141, 0
      %s144 = sadd.s32 %s143, 1
      %s145 = scalar_select %p142, %s143, %s144
      %p148 = pneg %p142
      %p149 = scmp.eq.s32.totalorder %s13, 3
      %p150 = por %p148, %p149
      %p151 = scmp.ne.s32.totalorder %s143, %s146
      %p152 = scmp.eq.s32.totalorder %s13, 0
      %p153 = por %p151, %p152
      %p154 = scmp.ne.s32.totalorder %s143, %s146
      %p155 = scmp.eq.s32.totalorder %s18, 3
      %p156 = por %p154, %p155
      %p157 = scmp.ne.s32.totalorder %s146, %s147
      %p158 = scmp.eq.s32.totalorder %s18, 0
      %p159 = por %p157, %p158
      %p160 = scmp.ne.s32.totalorder %s146, %s147
      %p161 = scmp.eq.s32.totalorder %s19, 3
      %p162 = por %p160, %p161
      %p164 = scmp.ne.s32.totalorder %s147, %s163
      %p165 = scmp.eq.s32.totalorder %s19, 0
      %p166 = por %p164, %p165
      %p167 = scmp.le.s32.totalorder 1, %s13
      %p168 = scmp.lt.s32.totalorder %s13, 5
      %p169 = pnand %p167, %p168
      %p170 = pneg %p169
      // Predicated region
      $region9: #{tpu_custom_call.1} parent=5 // pred_check
        _
      $region10: #{tpu_custom_call.1} parent=5 // pred_check_branch
        %172 = sbr.rel (%p169) target = $region12
      $region11: #{tpu_custom_call.1} parent=5 // pred_region
        %s173 = ssub.s32 %s13, 1
      $region12: #{tpu_custom_call.1} parent=5 // pred_fallthru
        _
      %p174 = scmp.lt.s32.totalorder %s13, 4
      // Predicated region
      $region13: #{tpu_custom_call.1} parent=5 // pred_check
        %p175 = pneg %p174
      $region14: #{tpu_custom_call.1} parent=5 // pred_check_branch
        %177 = sbr.rel (%p175) target = $region16
      $region15: #{tpu_custom_call.1} parent=5 // pred_region
        // Predicated region
        $region17: #{tpu_custom_call.1} parent=15 // pred_check
          %p178 = pneg %p47
        $region18: #{tpu_custom_call.1} parent=15 // pred_check_branch
          %180 = sbr.rel (%p178) target = $region20
        $region19: #{tpu_custom_call.1} parent=15 // pred_region
          %p181 = scmp.lt.s32.totalorder %s20, 1
          %s182 = scalar_select %p181, %s20, 1
          %p183 = scmp.lt.s32.totalorder %s21, 1
          %s184 = scalar_select %p183, %s21, 1
          %s185 = smul.addr %s184, 6
          %s186 = smul.addr %s182, 12
          %s187 = sadd.s32 %s185, %s186
          %s188 = smul.addr %s187, 2
          %s189 = scalar_lea.vmem %s0, %s188
        $region20: #{tpu_custom_call.1} parent=15 // pred_fallthru
          _
        // Predicated region
        $region21: #{tpu_custom_call.1} parent=15 // pred_check
          %p190 = pneg %p73
        $region22: #{tpu_custom_call.1} parent=15 // pred_check_branch
          %192 = sbr.rel (%p190) target = $region24
        $region23: #{tpu_custom_call.1} parent=15 // pred_region
          %p193 = scmp.lt.s32.totalorder %s20, 1
          %s194 = scalar_select %p193, %s20, 1
          %s195 = smul.addr %s194, 96
          %s196 = smul.addr %s195, 4
          %s197 = scalar_lea.vmem %s1, %s196
        $region24: #{tpu_custom_call.1} parent=15 // pred_fallthru
          _
        // Predicated region
        $region25: #{tpu_custom_call.1} parent=15 // pred_check
          %p198 = pneg %p99
        $region26: #{tpu_custom_call.1} parent=15 // pred_check_branch
          %200 = sbr.rel (%p198) target = $region28
        $region27: #{tpu_custom_call.1} parent=15 // pred_region
          %p201 = scmp.lt.s32.totalorder %s20, 1
          %s202 = scalar_select %p201, %s20, 1
          %s203 = scalar_lea.vmem %s2, %s202
        $region28: #{tpu_custom_call.1} parent=15 // pred_fallthru
          _
        // Predicated region
        $region29: #{tpu_custom_call.1} parent=15 // pred_check
          %p204 = pneg %p125
        $region30: #{tpu_custom_call.1} parent=15 // pred_check_branch
          %206 = sbr.rel (%p204) target = $region32
        $region31: #{tpu_custom_call.1} parent=15 // pred_region
          %p207 = scmp.lt.s32.totalorder %s20, 1
          %s208 = scalar_select %p207, %s20, 1
          %s209 = smul.addr %s208, 2
          %s210 = scalar_lea.vmem %s3, %s209
        $region32: #{tpu_custom_call.1} parent=15 // pred_fallthru
          _
      $region16: #{tpu_custom_call.1} parent=5 // pred_fallthru
        _
      %p211 = scmp.le.s32.totalorder 1, %s13
      %p212 = scmp.lt.s32.totalorder %s13, 5
      %p213 = pnand %p211, %p212
      %p214 = pneg %p213
      // Predicated region
      $region33: #{tpu_custom_call.1} parent=5 // pred_check
        _
      $region34: #{tpu_custom_call.1} parent=5 // pred_check_branch
        %216 = sbr.rel (%p213) target = $region36
      $region35: #{tpu_custom_call.1} parent=5 // pred_region
        %s217 = ssub.s32 %s13, 1
        %p218 = scmp.lt.s32.totalorder %s22, 1
        %s219 = scalar_select %p218, %s22, 1
        %p220 = scmp.lt.s32.totalorder %s23, 1
        %s221 = scalar_select %p220, %s23, 1
        %s222 = smul.addr %s221, 6
        %s223 = smul.addr %s219, 12
        %s224 = sadd.s32 %s222, %s223
        %s225 = smul.addr %s224, 2
        %s226 = scalar_lea.vmem %s0, %s225
        %p227 = pneg %p53
        %p228 = pneg %p50
        %p229 = scmp.lt.s32.totalorder %s22, 1
        %s230 = scalar_select %p229, %s22, 1
        %s231 = smul.addr %s230, 96
        %s232 = smul.addr %s231, 4
        %s233 = scalar_lea.vmem %s1, %s232
        %p234 = pneg %p79
        %p235 = pneg %p76
        %p236 = scmp.lt.s32.totalorder %s22, 1
        %s237 = scalar_select %p236, %s22, 1
        %s238 = scalar_lea.vmem %s2, %s237
        %p239 = pneg %p105
        %p240 = pneg %p102
        %p241 = scmp.lt.s32.totalorder %s22, 1
        %s242 = scalar_select %p241, %s22, 1
        %s243 = smul.addr %s242, 2
        %s244 = scalar_lea.vmem %s3, %s243
        %p245 = pneg %p131
        %p246 = pneg %p128
        %p247 = pneg %p159
        %p248 = pneg %p156
        %s249 = sand.u32 %s146, 1
        %s250 = scalar_lea.sflag [#allocation3], %s249
        %s251 = sand.u32 %s146, 1
        %s252 = smul.addr %s251, 2
        %s253 = scalar_lea.vmem [#allocation2], %s252
        %p254 = scmp.lt.s32.totalorder %s22, 1
        %s255 = scalar_select %p254, %s22, 1
        %p256 = scmp.lt.s32.totalorder %s23, 1
        %s257 = scalar_select %p256, %s23, 1
        %s258 = smul.addr %s257, 6
        %s259 = smul.addr %s255, 12
        %s260 = sadd.s32 %s258, %s259
        %s261 = smul.addr %s260, 2
        %s262 = scalar_lea.vmem %s0, %s261
        %p263 = scmp.lt.s32.totalorder %s22, 1
        %s264 = scalar_select %p263, %s22, 1
        %s265 = smul.addr %s264, 96
        %s266 = smul.addr %s265, 4
        %s267 = scalar_lea.vmem %s1, %s266
        %p268 = scmp.lt.s32.totalorder %s22, 1
        %s269 = scalar_select %p268, %s22, 1
        %s270 = scalar_lea.vmem %s2, %s269
        %p271 = scmp.lt.s32.totalorder %s22, 1
        %s272 = scalar_select %p271, %s22, 1
        %s273 = smul.addr %s272, 2
        %s274 = scalar_lea.vmem %s3, %s273
        %v275 = vld [vmem:[%s262] sm:$0xff]
        %v276 = vld [vmem:[%s262 + $0x8] sm:$0xf]
        %v277 = vld [vmem:[%s267] sm:$0xf]
        %v278 = vld [vmem:[%s267 + $0x4] sm:$0xf]
        %v279 = vld [vmem:[%s267 + $0x8] sm:$0xf]
        %v280 = vld [vmem:[%s267 + $0xc] sm:$0xf]
        %v281 = vld [vmem:[%s267 + $0x10] sm:$0xf]
        %v282 = vld [vmem:[%s267 + $0x14] sm:$0xf]
        %v283 = vld [vmem:[%s267 + $0x18] sm:$0xf]
        %v284 = vld [vmem:[%s267 + $0x1c] sm:$0xf]
        %v285 = vld [vmem:[%s267 + $0x20] sm:$0xf]
        %v286 = vld [vmem:[%s267 + $0x24] sm:$0xf]
        %v287 = vld [vmem:[%s267 + $0x28] sm:$0xf]
        %v288 = vld [vmem:[%s267 + $0x2c] sm:$0xf]
        %v289 = vld [vmem:[%s267 + $0x30] sm:$0xf]
        %v290 = vld [vmem:[%s267 + $0x34] sm:$0xf]
        %v291 = vld [vmem:[%s267 + $0x38] sm:$0xf]
        %v292 = vld [vmem:[%s267 + $0x3c] sm:$0xf]
        %v293 = vld [vmem:[%s267 + $0x40] sm:$0xf]
        %v294 = vld [vmem:[%s267 + $0x44] sm:$0xf]
        %v295 = vld [vmem:[%s267 + $0x48] sm:$0xf]
        %v296 = vld [vmem:[%s267 + $0x4c] sm:$0xf]
        %v297 = vld [vmem:[%s267 + $0x50] sm:$0xf]
        %v298 = vld [vmem:[%s267 + $0x54] sm:$0xf]
        %v299 = vld [vmem:[%s267 + $0x58] sm:$0xf]
        %v300 = vld [vmem:[%s267 + $0x5c] sm:$0xf]
        %v301 = vld [vmem:[%s267 + $0x60] sm:$0xf]
        %v302 = vld [vmem:[%s267 + $0x64] sm:$0xf]
        %v303 = vld [vmem:[%s267 + $0x68] sm:$0xf]
        %v304 = vld [vmem:[%s267 + $0x6c] sm:$0xf]
        %v305 = vld [vmem:[%s267 + $0x70] sm:$0xf]
        %v306 = vld [vmem:[%s267 + $0x74] sm:$0xf]
        %v307 = vld [vmem:[%s267 + $0x78] sm:$0xf]
        %v308 = vld [vmem:[%s267 + $0x7c] sm:$0xf]
        %v309 = vld [vmem:[%s267 + $0x80] sm:$0xf]
        %v310 = vld [vmem:[%s267 + $0x84] sm:$0xf]
        %v311 = vld [vmem:[%s267 + $0x88] sm:$0xf]
        %v312 = vld [vmem:[%s267 + $0x8c] sm:$0xf]
        %v313 = vld [vmem:[%s267 + $0x90] sm:$0xf]
        %v314 = vld [vmem:[%s267 + $0x94] sm:$0xf]
        %v315 = vld [vmem:[%s267 + $0x98] sm:$0xf]
        %v316 = vld [vmem:[%s267 + $0x9c] sm:$0xf]
        %v317 = vld [vmem:[%s267 + $0xa0] sm:$0xf]
        %v318 = vld [vmem:[%s267 + $0xa4] sm:$0xf]
        %v319 = vld [vmem:[%s267 + $0xa8] sm:$0xf]
        %v320 = vld [vmem:[%s267 + $0xac] sm:$0xf]
        %v321 = vld [vmem:[%s267 + $0xb0] sm:$0xf]
        %v322 = vld [vmem:[%s267 + $0xb4] sm:$0xf]
        %v323 = vld [vmem:[%s267 + $0xb8] sm:$0xf]
        %v324 = vld [vmem:[%s267 + $0xbc] sm:$0xf]
        %v325 = vld [vmem:[%s267 + $0xc0] sm:$0xf]
        %v326 = vld [vmem:[%s267 + $0xc4] sm:$0xf]
        %v327 = vld [vmem:[%s267 + $0xc8] sm:$0xf]
        %v328 = vld [vmem:[%s267 + $0xcc] sm:$0xf]
        %v329 = vld [vmem:[%s267 + $0xd0] sm:$0xf]
        %v330 = vld [vmem:[%s267 + $0xd4] sm:$0xf]
        %v331 = vld [vmem:[%s267 + $0xd8] sm:$0xf]
        %v332 = vld [vmem:[%s267 + $0xdc] sm:$0xf]
        %v333 = vld [vmem:[%s267 + $0xe0] sm:$0xf]
        %v334 = vld [vmem:[%s267 + $0xe4] sm:$0xf]
        %v335 = vld [vmem:[%s267 + $0xe8] sm:$0xf]
        %v336 = vld [vmem:[%s267 + $0xec] sm:$0xf]
        %v337 = vld [vmem:[%s267 + $0xf0] sm:$0xf]
        %v338 = vld [vmem:[%s267 + $0xf4] sm:$0xf]
        %v339 = vld [vmem:[%s267 + $0xf8] sm:$0xf]
        %v340 = vld [vmem:[%s267 + $0xfc] sm:$0xf]
        %v341 = vld [vmem:[%s267 + $0x100] sm:$0xf]
        %v342 = vld [vmem:[%s267 + $0x104] sm:$0xf]
        %v343 = vld [vmem:[%s267 + $0x108] sm:$0xf]
        %v344 = vld [vmem:[%s267 + $0x10c] sm:$0xf]
        %v345 = vld [vmem:[%s267 + $0x110] sm:$0xf]
        %v346 = vld [vmem:[%s267 + $0x114] sm:$0xf]
        %v347 = vld [vmem:[%s267 + $0x118] sm:$0xf]
        %v348 = vld [vmem:[%s267 + $0x11c] sm:$0xf]
        %v349 = vld [vmem:[%s267 + $0x120] sm:$0xf]
        %v350 = vld [vmem:[%s267 + $0x124] sm:$0xf]
        %v351 = vld [vmem:[%s267 + $0x128] sm:$0xf]
        %v352 = vld [vmem:[%s267 + $0x12c] sm:$0xf]
        %v353 = vld [vmem:[%s267 + $0x130] sm:$0xf]
        %v354 = vld [vmem:[%s267 + $0x134] sm:$0xf]
        %v355 = vld [vmem:[%s267 + $0x138] sm:$0xf]
        %v356 = vld [vmem:[%s267 + $0x13c] sm:$0xf]
        %v357 = vld [vmem:[%s267 + $0x140] sm:$0xf]
        %v358 = vld [vmem:[%s267 + $0x144] sm:$0xf]
        %v359 = vld [vmem:[%s267 + $0x148] sm:$0xf]
        %v360 = vld [vmem:[%s267 + $0x14c] sm:$0xf]
        %v361 = vld [vmem:[%s267 + $0x150] sm:$0xf]
        %v362 = vld [vmem:[%s267 + $0x154] sm:$0xf]
        %v363 = vld [vmem:[%s267 + $0x158] sm:$0xf]
        %v364 = vld [vmem:[%s267 + $0x15c] sm:$0xf]
        %v365 = vld [vmem:[%s267 + $0x160] sm:$0xf]
        %v366 = vld [vmem:[%s267 + $0x164] sm:$0xf]
        %v367 = vld [vmem:[%s267 + $0x168] sm:$0xf]
        %v368 = vld [vmem:[%s267 + $0x16c] sm:$0xf]
        %v369 = vld [vmem:[%s267 + $0x170] sm:$0xf]
        %v370 = vld [vmem:[%s267 + $0x174] sm:$0xf]
        %v371 = vld [vmem:[%s267 + $0x178] sm:$0xf]
        %v372 = vld [vmem:[%s267 + $0x17c] sm:$0xf]
        %v373 = vld [vmem:[%s270] sm:$0x1]
        %v375 = vperm.slane %v373, 0
        %378 = vst [vmem:[#allocation1] ss:$4 sm:$0xff] %v275
        %s380 = scalar_lea.vmem [#allocation1], 32
        %381 = vst [vmem:[%s380] ss:$4 sm:$0xff] %v276
        %v382 = vld.sshfl [vmem:[#allocation1] sm:$0xff pattern:$0x73625140]
        %v383 = vld.sshfl [vmem:[#allocation1 + $0x8] sm:$0xff pattern:$0x73625140]
        %v384 = vld.sshfl [vmem:[#allocation1 + $0x10] sm:$0xff pattern:$0x73625140]
        %v385 = vld.sshfl [vmem:[#allocation1 + $0x18] sm:$0xff pattern:$0x73625140]
        %v386 = vld.sshfl [vmem:[#allocation1 + $0x20] sm:$0xff pattern:$0x73625140]
        %v387 = vld.sshfl [vmem:[#allocation1 + $0x28] sm:$0xff pattern:$0x73625140]
        %v490 = vunpack.c.l.b16 %v277
        %v491 = vunpack.c.l.b16 %v278
        %v492 = vunpack.c.l.b16 %v279
        %v493 = vunpack.c.l.b16 %v280
        %v494 = vunpack.c.l.b16 %v281
        %v495 = vunpack.c.l.b16 %v282
        %v496 = vunpack.c.l.b16 %v283
        %v497 = vunpack.c.l.b16 %v284
        %v498 = vunpack.c.l.b16 %v285
        %v499 = vunpack.c.l.b16 %v286
        %v500 = vunpack.c.l.b16 %v287
        %v501 = vunpack.c.l.b16 %v288
        %v502 = vunpack.c.l.b16 %v289
        %v503 = vunpack.c.l.b16 %v290
        %v504 = vunpack.c.l.b16 %v291
        %v505 = vunpack.c.l.b16 %v292
        %v506 = vunpack.c.l.b16 %v293
        %v507 = vunpack.c.l.b16 %v294
        %v508 = vunpack.c.l.b16 %v295
        %v509 = vunpack.c.l.b16 %v296
        %v510 = vunpack.c.l.b16 %v297
        %v511 = vunpack.c.l.b16 %v298
        %v512 = vunpack.c.l.b16 %v299
        %v513 = vunpack.c.l.b16 %v300
        %v514 = vunpack.c.l.b16 %v301
        %v515 = vunpack.c.l.b16 %v302
        %v516 = vunpack.c.l.b16 %v303
        %v517 = vunpack.c.l.b16 %v304
        %v518 = vunpack.c.l.b16 %v305
        %v519 = vunpack.c.l.b16 %v306
        %v520 = vunpack.c.l.b16 %v307
        %v521 = vunpack.c.l.b16 %v308
        %v522 = vunpack.c.l.b16 %v309
        %v523 = vunpack.c.l.b16 %v310
        %v524 = vunpack.c.l.b16 %v311
        %v525 = vunpack.c.l.b16 %v312
        %v526 = vunpack.c.l.b16 %v313
        %v527 = vunpack.c.l.b16 %v314
        %v528 = vunpack.c.l.b16 %v315
        %v529 = vunpack.c.l.b16 %v316
        %v530 = vunpack.c.l.b16 %v317
        %v531 = vunpack.c.l.b16 %v318
        %v532 = vunpack.c.l.b16 %v319
        %v533 = vunpack.c.l.b16 %v320
        %v534 = vunpack.c.l.b16 %v321
        %v535 = vunpack.c.l.b16 %v322
        %v536 = vunpack.c.l.b16 %v323
        %v537 = vunpack.c.l.b16 %v324
        %v538 = vunpack.c.l.b16 %v325
        %v539 = vunpack.c.l.b16 %v326
        %v540 = vunpack.c.l.b16 %v327
        %v541 = vunpack.c.l.b16 %v328
        %v542 = vunpack.c.l.b16 %v329
        %v543 = vunpack.c.l.b16 %v330
        %v544 = vunpack.c.l.b16 %v331
        %v545 = vunpack.c.l.b16 %v332
        %v546 = vunpack.c.l.b16 %v333
        %v547 = vunpack.c.l.b16 %v334
        %v548 = vunpack.c.l.b16 %v335
        %v549 = vunpack.c.l.b16 %v336
        %v550 = vunpack.c.l.b16 %v337
        %v551 = vunpack.c.l.b16 %v338
        %v552 = vunpack.c.l.b16 %v339
        %v553 = vunpack.c.l.b16 %v340
        %v554 = vunpack.c.l.b16 %v341
        %v555 = vunpack.c.l.b16 %v342
        %v556 = vunpack.c.l.b16 %v343
        %v557 = vunpack.c.l.b16 %v344
        %v558 = vunpack.c.l.b16 %v345
        %v559 = vunpack.c.l.b16 %v346
        %v560 = vunpack.c.l.b16 %v347
        %v561 = vunpack.c.l.b16 %v348
        %v562 = vunpack.c.l.b16 %v349
        %v563 = vunpack.c.l.b16 %v350
        %v564 = vunpack.c.l.b16 %v351
        %v565 = vunpack.c.l.b16 %v352
        %v566 = vunpack.c.l.b16 %v353
        %v567 = vunpack.c.l.b16 %v354
        %v568 = vunpack.c.l.b16 %v355
        %v569 = vunpack.c.l.b16 %v356
        %v570 = vunpack.c.l.b16 %v357
        %v571 = vunpack.c.l.b16 %v358
        %v572 = vunpack.c.l.b16 %v359
        %v573 = vunpack.c.l.b16 %v360
        %v574 = vunpack.c.l.b16 %v361
        %v575 = vunpack.c.l.b16 %v362
        %v576 = vunpack.c.l.b16 %v363
        %v577 = vunpack.c.l.b16 %v364
        %v578 = vunpack.c.l.b16 %v365
        %v579 = vunpack.c.l.b16 %v366
        %v580 = vunpack.c.l.b16 %v367
        %v581 = vunpack.c.l.b16 %v368
        %v582 = vunpack.c.l.b16 %v369
        %v583 = vunpack.c.l.b16 %v370
        %v584 = vunpack.c.l.b16 %v371
        %v585 = vunpack.c.l.b16 %v372
        %v586 = vpack.c.b16 %v491, %v490
        %v587 = vpack.c.b16 %v493, %v492
        %v588 = vpack.c.b16 %v495, %v494
        %v589 = vpack.c.b16 %v497, %v496
        %v590 = vpack.c.b16 %v499, %v498
        %v591 = vpack.c.b16 %v501, %v500
        %v592 = vpack.c.b16 %v503, %v502
        %v593 = vpack.c.b16 %v505, %v504
        %v594 = vpack.c.b16 %v507, %v506
        %v595 = vpack.c.b16 %v509, %v508
        %v596 = vpack.c.b16 %v511, %v510
        %v597 = vpack.c.b16 %v513, %v512
        %v598 = vpack.c.b16 %v515, %v514
        %v599 = vpack.c.b16 %v517, %v516
        %v600 = vpack.c.b16 %v519, %v518
        %v601 = vpack.c.b16 %v521, %v520
        %v602 = vpack.c.b16 %v523, %v522
        %v603 = vpack.c.b16 %v525, %v524
        %v604 = vpack.c.b16 %v527, %v526
        %v605 = vpack.c.b16 %v529, %v528
        %v606 = vpack.c.b16 %v531, %v530
        %v607 = vpack.c.b16 %v533, %v532
        %v608 = vpack.c.b16 %v535, %v534
        %v609 = vpack.c.b16 %v537, %v536
        %v610 = vpack.c.b16 %v539, %v538
        %v611 = vpack.c.b16 %v541, %v540
        %v612 = vpack.c.b16 %v543, %v542
        %v613 = vpack.c.b16 %v545, %v544
        %v614 = vpack.c.b16 %v547, %v546
        %v615 = vpack.c.b16 %v549, %v548
        %v616 = vpack.c.b16 %v551, %v550
        %v617 = vpack.c.b16 %v553, %v552
        %v618 = vpack.c.b16 %v555, %v554
        %v619 = vpack.c.b16 %v557, %v556
        %v620 = vpack.c.b16 %v559, %v558
        %v621 = vpack.c.b16 %v561, %v560
        %v622 = vpack.c.b16 %v563, %v562
        %v623 = vpack.c.b16 %v565, %v564
        %v624 = vpack.c.b16 %v567, %v566
        %v625 = vpack.c.b16 %v569, %v568
        %v626 = vpack.c.b16 %v571, %v570
        %v627 = vpack.c.b16 %v573, %v572
        %v628 = vpack.c.b16 %v575, %v574
        %v629 = vpack.c.b16 %v577, %v576
        %v630 = vpack.c.b16 %v579, %v578
        %v631 = vpack.c.b16 %v581, %v580
        %v632 = vpack.c.b16 %v583, %v582
        %v633 = vpack.c.b16 %v585, %v584
        %682 = vmatpush.bf16.msra.mxu0 %v593
        %683 = vmatpush.bf16.msra.mxu0 %v592
        %684 = vmatpush.bf16.msra.mxu0 %v591
        %685 = vmatpush.bf16.msra.mxu0 %v590
        %686 = vmatpush.bf16.msra.mxu0 %v589
        %687 = vmatpush.bf16.msra.mxu0 %v588
        %688 = vmatpush.bf16.msra.mxu0 %v587
        %689 = vmatpush.bf16.msra.mxu0 %v586
        %690 = vmatmul.bf16.gmra.mxu0 %v382
        %v691 = vpop.f32.mrf.mxu0
        %v692 = vadd.f32 %v375, %v691
        %v693 = vpop.f32.mrf.mxu0
        %694 = vdwg.mxu0
        %695 = vmatpush.bf16.msra.mxu0 %v601
        %696 = vmatpush.bf16.msra.mxu0 %v600
        %697 = vmatpush.bf16.msra.mxu0 %v599
        %698 = vmatpush.bf16.msra.mxu0 %v598
        %699 = vmatpush.bf16.msra.mxu0 %v597
        %700 = vmatpush.bf16.msra.mxu0 %v596
        %701 = vmatpush.bf16.msra.mxu0 %v595
        %702 = vmatpush.bf16.msra.mxu0 %v594
        %703 = vmatmul.bf16.gmra.mxu0 %v383
        %v704 = vpop.f32.mrf.mxu0
        %v705 = vadd.f32 %v692, %v704
        %v706 = vpop.f32.mrf.mxu0
        %707 = vdwg.mxu0
        %708 = vmatpush.bf16.msra.mxu0 %v609
        %709 = vmatpush.bf16.msra.mxu0 %v608
        %710 = vmatpush.bf16.msra.mxu0 %v607
        %711 = vmatpush.bf16.msra.mxu0 %v606
        %712 = vmatpush.bf16.msra.mxu0 %v605
        %713 = vmatpush.bf16.msra.mxu0 %v604
        %714 = vmatpush.bf16.msra.mxu0 %v603
        %715 = vmatpush.bf16.msra.mxu0 %v602
        %716 = vmatmul.bf16.gmra.mxu0 %v384
        %v717 = vpop.f32.mrf.mxu0
        %v718 = vadd.f32 %v705, %v717
        %v719 = vpop.f32.mrf.mxu0
        %720 = vdwg.mxu0
        %721 = vmatpush.bf16.msra.mxu0 %v617
        %722 = vmatpush.bf16.msra.mxu0 %v616
        %723 = vmatpush.bf16.msra.mxu0 %v615
        %724 = vmatpush.bf16.msra.mxu0 %v614
        %725 = vmatpush.bf16.msra.mxu0 %v613
        %726 = vmatpush.bf16.msra.mxu0 %v612
        %727 = vmatpush.bf16.msra.mxu0 %v611
        %728 = vmatpush.bf16.msra.mxu0 %v610
        %729 = vmatmul.bf16.gmra.mxu0 %v385
        %v730 = vpop.f32.mrf.mxu0
        %v731 = vadd.f32 %v718, %v730
        %v732 = vpop.f32.mrf.mxu0
        %733 = vdwg.mxu0
        %734 = vmatpush.bf16.msra.mxu0 %v625
        %735 = vmatpush.bf16.msra.mxu0 %v624
        %736 = vmatpush.bf16.msra.mxu0 %v623
        %737 = vmatpush.bf16.msra.mxu0 %v622
        %738 = vmatpush.bf16.msra.mxu0 %v621
        %739 = vmatpush.bf16.msra.mxu0 %v620
        %740 = vmatpush.bf16.msra.mxu0 %v619
        %741 = vmatpush.bf16.msra.mxu0 %v618
        %742 = vmatmul.bf16.gmra.mxu0 %v386
        %v743 = vpop.f32.mrf.mxu0
        %v744 = vadd.f32 %v731, %v743
        %v745 = vpop.f32.mrf.mxu0
        %746 = vdwg.mxu0
        %747 = vmatpush.bf16.msra.mxu0 %v633
        %748 = vmatpush.bf16.msra.mxu0 %v632
        %749 = vmatpush.bf16.msra.mxu0 %v631
        %750 = vmatpush.bf16.msra.mxu0 %v630
        %751 = vmatpush.bf16.msra.mxu0 %v629
        %752 = vmatpush.bf16.msra.mxu0 %v628
        %753 = vmatpush.bf16.msra.mxu0 %v627
        %754 = vmatpush.bf16.msra.mxu0 %v626
        %755 = vmatmul.bf16.gmra.mxu0 %v387
        %v756 = vpop.f32.mrf.mxu0
        %v757 = vadd.f32 %v744, %v756
        %v758 = vpop.f32.mrf.mxu0
        %759 = vdwg.mxu0
        %v760 = vld [vmem:[%s274] sm:$0x3]
        %v761 = vunpack.c.l.bf16 %v760
        %v762 = vadd.f32 %v757, %v761
        %v763 = vpack.c.bf16 %v762, %v762
        %vm764 = vcmask 517120
        %765 = vst.msk [vmem:[%s253] sm:$0x3] %vm764, %v763
        %s766 = sand.u32 %s146, 1
        %s767 = scalar_lea.sflag [#allocation3], %s766
        %s768 = sand.u32 %s146, 1
        %s769 = smul.addr %s768, 2
        %s770 = scalar_lea.vmem [#allocation2], %s769
        // Predicated region
        $region37: #{tpu_custom_call.1} parent=35 // pred_check
          %p771 = pneg %p156
        $region38: #{tpu_custom_call.1} parent=35 // pred_check_branch
          %773 = sbr.rel (%p771) target = $region40
        $region39: #{tpu_custom_call.1} parent=35 // pred_region
          %775 = vsyncadd %s767, 0
          %s776 = smul.addr %s22, 2
          %s777 = sadd.s32 %s23, %s776
          %s778 = smul.addr %s777, 2
          %s779 = scalar_lea.hbm %s4, %s778
          %s781 = sshll.u32 %s770, 4
          %s782 = int_to_ptr.vmem [resolvable:$true] %s781
          %s783 = sshll.u32 %s779, 4
          %s784 = int_to_ptr.hbm [resolvable:$true] %s783
          %786 = dma.vmem_to_hbm [thread:$0]  %s782, 32, %s784, %s767
        $region40: #{tpu_custom_call.1} parent=35 // pred_fallthru
          _
      $region36: #{tpu_custom_call.1} parent=5 // pred_fallthru
        _
      %p787 = scmp.le.s32.totalorder 2, %s13
      // Predicated region
      $region41: #{tpu_custom_call.1} parent=5 // pred_check
        %p788 = pneg %p787
      $region42: #{tpu_custom_call.1} parent=5 // pred_check_branch
        %790 = sbr.rel (%p788) target = $region44
      $region43: #{tpu_custom_call.1} parent=5 // pred_region
        %s791 = ssub.s32 %s13, 2
        // Predicated region
        $region45: #{tpu_custom_call.1} parent=43 // pred_check
          %p792 = pneg %p162
        $region46: #{tpu_custom_call.1} parent=43 // pred_check_branch
          %794 = sbr.rel (%p792) target = $region48
        $region47: #{tpu_custom_call.1} parent=43 // pred_region
          %s795 = sand.u32 %s147, 1
          %s796 = scalar_lea.sflag [#allocation3], %s795
          %s797 = sand.u32 %s147, 1
          %s798 = smul.addr %s797, 2
          %s799 = scalar_lea.vmem [#allocation2], %s798
          %801 = dma.done %s796, 32
        $region48: #{tpu_custom_call.1} parent=43 // pred_fallthru
          _
      $region44: #{tpu_custom_call.1} parent=5 // pred_fallthru
        _
    $region6: #{tpu_custom_call.1} parent=1 // loop_footer
      %s17 = sadd.s32 1, %s13
    $region7: #{tpu_custom_call.1} parent=1 // loop_footer_branch
      %12 = sbr.rel target = $region3
    $region8: #{tpu_custom_call.1} parent=1 // loop_exit
      _
    %802 = vsyncpa [#allocation3], 1
    %s803 = scalar_lea.sflag [#allocation3], 1
    %804 = vsyncpa %s803, 1

</llo_original>
